<compile_context>
chip_gen: v7x
topology: tpu7x:2x2x1
jax: 0.10.0
libtpu: 0.0.40
codegen_flags: <defaults>
</compile_context>

<pallas_src>
import functools

import numpy as np
import jax
import jax.numpy as jnp
from jax import lax
from jax.experimental import pallas as pl
from jax.experimental.pallas import tpu as pltpu

C = 20  # hidden channel count from Conv2d(., 20, ...)


def fused_kernel(x_ref, w3_ref, b3_ref, w7_ref, b7_ref, out_ref, *, H, W):
    """One batch element per grid step, computed in a lane-dense (C, H*W) layout.

    x_ref  : (1, 1, HW)  flattened single-channel input (HW on the lane axis)
    w3_ref : (C, 9)      conv3 weights, tap index kh*3+kw along lanes
    b3_ref : (C, 1)
    w7_ref : (4, C)      conv7 weights, row = tap kh*2+kw
    b7_ref : (1, 1)
    out_ref: (1, C, HW)  NCHW-flat output block (lane-dense last dim)
    """
    HW = H * W
    x = x_ref[0]                                        # (1, HW) f32

    # Column index of each flattened position.  A flat shift only produces a
    # wrong (row-wrapped) value when the tap reads one column left/right, so
    # these two masks (computed once) are all the boundary handling we need.
    col = lax.broadcasted_iota(jnp.int32, (1, HW), 1) % W
    m_left = col >= 1            # valid when reading one column to the left
    m_right = col <= (W - 2)     # valid when reading one column to the right

    # Zero-padded flat input: every 3x3 tap becomes a static slice (SAME pad
    # handled in-kernel, no wrapper-side jnp.pad pass over HBM).
    zpad = jnp.zeros((1, W + 1), jnp.float32)
    xbuf = jnp.concatenate([zpad, x, zpad], axis=1)     # (1, HW + 2W + 2)

    def tap3(dh, dw):
        s = dh * W + dw
        t = xbuf[:, W + 1 + s: W + 1 + s + HW]          # (1, HW)
        if dw > 0:
            t = jnp.where(m_right, t, 0.0)
        elif dw < 0:
            t = jnp.where(m_left, t, 0.0)
        return t

    # ---- v1 = t3(x): 3x3 conv, 1 -> C channels, SAME padding ----------------
    # Nine outer-product FMAs: (C, 1) weight column x shifted (1, HW) input row.
    acc = None
    for kh in range(3):
        for kw in range(3):
            k = kh * 3 + kw
            term = w3_ref[:, k:k + 1] * tap3(kh - 1, kw - 1)     # (C, HW)
            acc = term if acc is None else acc + term
    v1 = acc + b3_ref[...]                                       # (C, HW)

    # ---- v2 = t6(v1): ReLU ---------------------------------------------------
    v2 = jnp.maximum(v1, 0.0)

    # ---- v3 = t7(v2): 2x2 conv, C -> 1 channel, zero pad bottom/right --------
    # Channel reduction for all four taps at once on the (otherwise idle) MXU;
    # spatial taps are static slices of a right-padded buffer + column mask.
    r = jnp.dot(w7_ref[...], v2, preferred_element_type=jnp.float32)   # (4, HW)
    rbuf = jnp.concatenate([r, jnp.zeros((4, W + 1), jnp.float32)], axis=1)
    v3 = rbuf[0:1, 0:HW]                                               # tap (0,0)
    v3 = v3 + jnp.where(m_right, rbuf[1:2, 1:1 + HW], 0.0)             # tap (0,1)
    v3 = v3 + rbuf[2:3, W:W + HW]                                      # tap (1,0)
    v3 = v3 + jnp.where(m_right, rbuf[3:4, W + 1:W + 1 + HW], 0.0)     # tap (1,1)
    v3 = v3 + b7_ref[...]                                              # (1, HW)

    # ---- collapsed residual chain --------------------------------------------
    #   v4 = v3 + v1; v5 = v4 + v2; v6 = v5 + x; v7 = x + v6
    #   => v7 = v1 + v2 + (2*x + v3)   (x, v3 broadcast over the C sublanes)
    out_ref[0] = (v1 + v2) + (2.0 * x + v3)                            # (C, HW)


def model_forward(x_nchw, w3_oihw, b3, w7_oihw, b7):
    """x_nchw: (N, 1, H, W) float32 -> (N, C, H, W) float32."""
    N, cin, H, W = x_nchw.shape
    assert cin == 1
    HW = H * W

    # Free, contiguous reshapes only (no transpose / pad passes over HBM).
    x_flat = x_nchw.reshape(N, 1, HW)
    w3_mat = w3_oihw.reshape(C, 9)                  # [c, kh*3+kw]
    b3_col = b3.reshape(C, 1)
    w7_mat = jnp.transpose(w7_oihw.reshape(C, 4))   # [kh*2+kw, c]
    b7_mat = b7.reshape(1, 1)

    kernel = functools.partial(fused_kernel, H=H, W=W)

    out_flat = pl.pallas_call(
        kernel,
        out_shape=jax.ShapeDtypeStruct((N, C, HW), jnp.float32),
        grid_spec=pltpu.PrefetchScalarGridSpec(
            num_scalar_prefetch=0,
            grid=(N,),   # one batch element per step; >=2 parallel steps feeds both v7x TCs
            in_specs=[
                pl.BlockSpec((1, 1, HW), lambda n: (n, 0, 0)),
                pl.BlockSpec((C, 9), lambda n: (0, 0)),
                pl.BlockSpec((C, 1), lambda n: (0, 0)),
                pl.BlockSpec((4, C), lambda n: (0, 0)),
                pl.BlockSpec((1, 1), lambda n: (0, 0)),
            ],
            out_specs=pl.BlockSpec((1, C, HW), lambda n: (n, 0, 0)),
        ),
        compiler_params=pltpu.CompilerParams(
            dimension_semantics=("parallel",)),
    )(x_flat, w3_mat, b3_col, w7_mat, b7_mat)

    # NCHW-flat -> NCHW is a free contiguous reshape (no transpose pass).
    return out_flat.reshape(N, C, H, W)


def ref_forward(x_nchw, w3_oihw, b3, w7_oihw, b7):
    """Pure-JAX reference (same corrected semantics), NCHW."""
    dn = ('NCHW', 'OIHW', 'NCHW')
    v1 = lax.conv_general_dilated(x_nchw, w3_oihw, (1, 1), ((1, 1), (1, 1)),
                                  dimension_numbers=dn) + b3[None, :, None, None]
    v2 = jnp.maximum(v1, 0.0)
    v3 = lax.conv_general_dilated(v2, w7_oihw, (1, 1), ((0, 1), (0, 1)),
                                  dimension_numbers=dn) + b7[None, :, None, None]
    v4 = v3 + v1
    v5 = v4 + v2
    v6 = v5 + x_nchw
    v7 = x_nchw + v6
    return v7


if __name__ == "__main__":
    key = jax.random.PRNGKey(0)
    k1, k2, k3, k4, k5 = jax.random.split(key, 5)

    N, H, W = 2, 16, 16
    x = jax.random.normal(k1, (N, 1, H, W), dtype=jnp.float32)

    # deterministic synthetic parameters (shapes from the module's __init__)
    w3 = jax.random.normal(k2, (C, 1, 3, 3), dtype=jnp.float32) * 0.1   # t3 weight
    b3 = jax.random.normal(k3, (C,), dtype=jnp.float32) * 0.1           # t3 bias
    w7 = jax.random.normal(k4, (1, C, 2, 2), dtype=jnp.float32) * 0.1   # t7 weight
    b7 = jax.random.normal(k5, (1,), dtype=jnp.float32) * 0.1           # t7 bias

    out = jax.jit(model_forward)(x, w3, b3, w7, b7)
    out = jax.block_until_ready(out)

    ref = ref_forward(x, w3, b3, w7, b7)
    assert out.shape == ref.shape == (N, C, H, W)
    np.testing.assert_allclose(np.asarray(out), np.asarray(ref), rtol=1e-4, atol=1e-4)

    print("KERNEL_OK")
</pallas_src>

<mosaic_0001>
module attributes {stable_mosaic.version = 11 : i64} {
  func.func @fused_kernel(%arg0: i32, %arg1: memref<1x1x256xf32, #tpu.memory_space<vmem>>, %arg2: memref<20x9xf32, #tpu.memory_space<vmem>>, %arg3: memref<20x1xf32, #tpu.memory_space<vmem>>, %arg4: memref<4x20xf32, #tpu.memory_space<vmem>>, %arg5: memref<1x1xf32, #tpu.memory_space<vmem>>, %arg6: memref<1x20x256xf32, #tpu.memory_space<vmem>>) attributes {dimension_semantics = [#tpu.dimension_semantics<parallel>], iteration_bounds = array<i64: 2>, scalar_prefetch = 0 : i64, scratch_operands = 0 : i64, tpu.core_type = #tpu.core_type<tc>, window_params = [{transform_indices = @transform_0, window_bounds = array<i64: 1, 1, 256>}, {pipeline_mode = #tpu.pipeline_mode<synchronous>, transform_indices = @transform_1, window_bounds = array<i64: 20, 9>}, {pipeline_mode = #tpu.pipeline_mode<synchronous>, transform_indices = @transform_2, window_bounds = array<i64: 20, 1>}, {pipeline_mode = #tpu.pipeline_mode<synchronous>, transform_indices = @transform_3, window_bounds = array<i64: 4, 20>}, {pipeline_mode = #tpu.pipeline_mode<synchronous>, transform_indices = @transform_4, window_bounds = array<i64: 1, 1>}, {transform_indices = @transform_5, window_bounds = array<i64: 1, 20, 256>}]} {
    %c0 = arith.constant 0 : index
    %c0_0 = arith.constant 0 : index
    %c0_1 = arith.constant 0 : index
    %0 = vector.load %arg1[%c0, %c0_0, %c0_1] : memref<1x1x256xf32, #tpu.memory_space<vmem>>, vector<1x1x256xf32>
    %1 = vector.shape_cast %0 : vector<1x1x256xf32> to vector<1x256xf32>
    %2 = tpu.iota {dimensions = array<i32: 1>} : vector<1x256xi32>
    %c16_i32 = arith.constant 16 : i32
    %c0_i32 = arith.constant 0 : i32
    %3 = arith.cmpi eq, %c16_i32, %c0_i32 : i32
    %c1_i32 = arith.constant 1 : i32
    %4 = arith.select %3, %c1_i32, %c16_i32 : i32
    %5 = vector.broadcast %4 : i32 to vector<1x256xi32>
    %6 = arith.remsi %2, %5 : vector<1x256xi32>
    %c0_i32_2 = arith.constant 0 : i32
    %7 = vector.broadcast %c0_i32_2 : i32 to vector<1x256xi32>
    %8 = arith.cmpi ne, %6, %7 : vector<1x256xi32>
    %c0_i32_3 = arith.constant 0 : i32
    %9 = vector.broadcast %c0_i32_3 : i32 to vector<1x256xi32>
    %10 = arith.cmpi slt, %6, %9 : vector<1x256xi32>
    %c0_i32_4 = arith.constant 0 : i32
    %11 = arith.cmpi slt, %4, %c0_i32_4 : i32
    %12 = vector.broadcast %11 : i1 to vector<1x256xi1>
    %13 = vector.broadcast %12 : vector<1x256xi1> to vector<1x256xi1>
    %14 = arith.xori %10, %13 : vector<1x256xi1>
    %15 = arith.andi %14, %8 : vector<1x256xi1>
    %16 = vector.broadcast %4 : i32 to vector<1x256xi32>
    %17 = arith.addi %6, %16 : vector<1x256xi32>
    %18 = arith.select %15, %17, %6 : vector<1x256xi1>, vector<1x256xi32>
    %c1_i32_5 = arith.constant 1 : i32
    %19 = vector.broadcast %c1_i32_5 : i32 to vector<1x256xi32>
    %20 = arith.cmpi sge, %18, %19 : vector<1x256xi32>
    %c14_i32 = arith.constant 14 : i32
    %21 = vector.broadcast %c14_i32 : i32 to vector<1x256xi32>
    %22 = arith.cmpi sle, %18, %21 : vector<1x256xi32>
    %cst = arith.constant 0.000000e+00 : f32
    %23 = vector.broadcast %cst : f32 to vector<1x17xf32>
    %24 = tpu.concatenate %23, %1, %23 in 1 : vector<1x17xf32>, vector<1x256xf32>, vector<1x17xf32> -> vector<1x290xf32>
    %c0_6 = arith.constant 0 : index
    %c0_7 = arith.constant 0 : index
    %25 = vector.load %arg2[%c0_6, %c0_7] : memref<20x9xf32, #tpu.memory_space<vmem>>, vector<20x1xf32>
    %26 = vector.extract_strided_slice %24 {offsets = [0, 0], sizes = [1, 256], strides = [1, 1]} : vector<1x290xf32> to vector<1x256xf32>
    %cst_8 = arith.constant 0.000000e+00 : f32
    %27 = vector.broadcast %cst_8 : f32 to vector<1x256xf32>
    %28 = arith.select %20, %26, %27 : vector<1x256xi1>, vector<1x256xf32>
    %29 = vector.broadcast %25 : vector<20x1xf32> to vector<20x256xf32>
    %30 = vector.broadcast %28 : vector<1x256xf32> to vector<20x256xf32>
    %31 = arith.mulf %29, %30 : vector<20x256xf32>
    %c0_9 = arith.constant 0 : index
    %c1 = arith.constant 1 : index
    %32 = vector.load %arg2[%c0_9, %c1] : memref<20x9xf32, #tpu.memory_space<vmem>>, vector<20x1xf32>
    %33 = vector.extract_strided_slice %24 {offsets = [0, 1], sizes = [1, 256], strides = [1, 1]} : vector<1x290xf32> to vector<1x256xf32>
    %34 = vector.broadcast %32 : vector<20x1xf32> to vector<20x256xf32>
    %35 = vector.broadcast %33 : vector<1x256xf32> to vector<20x256xf32>
    %36 = arith.mulf %34, %35 : vector<20x256xf32>
    %37 = arith.addf %31, %36 : vector<20x256xf32>
    %c0_10 = arith.constant 0 : index
    %c2 = arith.constant 2 : index
    %38 = vector.load %arg2[%c0_10, %c2] : memref<20x9xf32, #tpu.memory_space<vmem>>, vector<20x1xf32>
    %39 = vector.extract_strided_slice %24 {offsets = [0, 2], sizes = [1, 256], strides = [1, 1]} : vector<1x290xf32> to vector<1x256xf32>
    %cst_11 = arith.constant 0.000000e+00 : f32
    %40 = vector.broadcast %cst_11 : f32 to vector<1x256xf32>
    %41 = arith.select %22, %39, %40 : vector<1x256xi1>, vector<1x256xf32>
    %42 = vector.broadcast %38 : vector<20x1xf32> to vector<20x256xf32>
    %43 = vector.broadcast %41 : vector<1x256xf32> to vector<20x256xf32>
    %44 = arith.mulf %42, %43 : vector<20x256xf32>
    %45 = arith.addf %37, %44 : vector<20x256xf32>
    %c0_12 = arith.constant 0 : index
    %c3 = arith.constant 3 : index
    %46 = vector.load %arg2[%c0_12, %c3] : memref<20x9xf32, #tpu.memory_space<vmem>>, vector<20x1xf32>
    %47 = vector.extract_strided_slice %24 {offsets = [0, 16], sizes = [1, 256], strides = [1, 1]} : vector<1x290xf32> to vector<1x256xf32>
    %cst_13 = arith.constant 0.000000e+00 : f32
    %48 = vector.broadcast %cst_13 : f32 to vector<1x256xf32>
    %49 = arith.select %20, %47, %48 : vector<1x256xi1>, vector<1x256xf32>
    %50 = vector.broadcast %46 : vector<20x1xf32> to vector<20x256xf32>
    %51 = vector.broadcast %49 : vector<1x256xf32> to vector<20x256xf32>
    %52 = arith.mulf %50, %51 : vector<20x256xf32>
    %53 = arith.addf %45, %52 : vector<20x256xf32>
    %c0_14 = arith.constant 0 : index
    %c4 = arith.constant 4 : index
    %54 = vector.load %arg2[%c0_14, %c4] : memref<20x9xf32, #tpu.memory_space<vmem>>, vector<20x1xf32>
    %55 = vector.extract_strided_slice %24 {offsets = [0, 17], sizes = [1, 256], strides = [1, 1]} : vector<1x290xf32> to vector<1x256xf32>
    %56 = vector.broadcast %54 : vector<20x1xf32> to vector<20x256xf32>
    %57 = vector.broadcast %55 : vector<1x256xf32> to vector<20x256xf32>
    %58 = arith.mulf %56, %57 : vector<20x256xf32>
    %59 = arith.addf %53, %58 : vector<20x256xf32>
    %c0_15 = arith.constant 0 : index
    %c5 = arith.constant 5 : index
    %60 = vector.load %arg2[%c0_15, %c5] : memref<20x9xf32, #tpu.memory_space<vmem>>, vector<20x1xf32>
    %61 = vector.extract_strided_slice %24 {offsets = [0, 18], sizes = [1, 256], strides = [1, 1]} : vector<1x290xf32> to vector<1x256xf32>
    %cst_16 = arith.constant 0.000000e+00 : f32
    %62 = vector.broadcast %cst_16 : f32 to vector<1x256xf32>
    %63 = arith.select %22, %61, %62 : vector<1x256xi1>, vector<1x256xf32>
    %64 = vector.broadcast %60 : vector<20x1xf32> to vector<20x256xf32>
    %65 = vector.broadcast %63 : vector<1x256xf32> to vector<20x256xf32>
    %66 = arith.mulf %64, %65 : vector<20x256xf32>
    %67 = arith.addf %59, %66 : vector<20x256xf32>
    %c0_17 = arith.constant 0 : index
    %c6 = arith.constant 6 : index
    %68 = vector.load %arg2[%c0_17, %c6] : memref<20x9xf32, #tpu.memory_space<vmem>>, vector<20x1xf32>
    %69 = vector.extract_strided_slice %24 {offsets = [0, 32], sizes = [1, 256], strides = [1, 1]} : vector<1x290xf32> to vector<1x256xf32>
    %cst_18 = arith.constant 0.000000e+00 : f32
    %70 = vector.broadcast %cst_18 : f32 to vector<1x256xf32>
    %71 = arith.select %20, %69, %70 : vector<1x256xi1>, vector<1x256xf32>
    %72 = vector.broadcast %68 : vector<20x1xf32> to vector<20x256xf32>
    %73 = vector.broadcast %71 : vector<1x256xf32> to vector<20x256xf32>
    %74 = arith.mulf %72, %73 : vector<20x256xf32>
    %75 = arith.addf %67, %74 : vector<20x256xf32>
    %c0_19 = arith.constant 0 : index
    %c7 = arith.constant 7 : index
    %76 = vector.load %arg2[%c0_19, %c7] : memref<20x9xf32, #tpu.memory_space<vmem>>, vector<20x1xf32>
    %77 = vector.extract_strided_slice %24 {offsets = [0, 33], sizes = [1, 256], strides = [1, 1]} : vector<1x290xf32> to vector<1x256xf32>
    %78 = vector.broadcast %76 : vector<20x1xf32> to vector<20x256xf32>
    %79 = vector.broadcast %77 : vector<1x256xf32> to vector<20x256xf32>
    %80 = arith.mulf %78, %79 : vector<20x256xf32>
    %81 = arith.addf %75, %80 : vector<20x256xf32>
    %c0_20 = arith.constant 0 : index
    %c8 = arith.constant 8 : index
    %82 = vector.load %arg2[%c0_20, %c8] : memref<20x9xf32, #tpu.memory_space<vmem>>, vector<20x1xf32>
    %83 = vector.extract_strided_slice %24 {offsets = [0, 34], sizes = [1, 256], strides = [1, 1]} : vector<1x290xf32> to vector<1x256xf32>
    %cst_21 = arith.constant 0.000000e+00 : f32
    %84 = vector.broadcast %cst_21 : f32 to vector<1x256xf32>
    %85 = arith.select %22, %83, %84 : vector<1x256xi1>, vector<1x256xf32>
    %86 = vector.broadcast %82 : vector<20x1xf32> to vector<20x256xf32>
    %87 = vector.broadcast %85 : vector<1x256xf32> to vector<20x256xf32>
    %88 = arith.mulf %86, %87 : vector<20x256xf32>
    %89 = arith.addf %81, %88 : vector<20x256xf32>
    %c0_22 = arith.constant 0 : index
    %c0_23 = arith.constant 0 : index
    %90 = vector.load %arg3[%c0_22, %c0_23] : memref<20x1xf32, #tpu.memory_space<vmem>>, vector<20x1xf32>
    %91 = vector.broadcast %90 : vector<20x1xf32> to vector<20x256xf32>
    %92 = arith.addf %89, %91 : vector<20x256xf32>
    %cst_24 = arith.constant 0.000000e+00 : f32
    %93 = vector.broadcast %cst_24 : f32 to vector<20x256xf32>
    %94 = arith.maximumf %92, %93 : vector<20x256xf32>
    %c0_25 = arith.constant 0 : index
    %c0_26 = arith.constant 0 : index
    %95 = vector.load %arg4[%c0_25, %c0_26] : memref<4x20xf32, #tpu.memory_space<vmem>>, vector<4x20xf32>
    %cst_27 = arith.constant dense<0.000000e+00> : vector<4x256xf32>
    %96 = tpu.matmul %95, %94, %cst_27 {dimension_numbers = #tpu.dot_dimension_numbers<[1], [0], [0], [1], [0, 0, 1, 1], [], []>} : vector<4x20xf32>, vector<20x256xf32>, vector<4x256xf32> -> vector<4x256xf32>
    %cst_28 = arith.constant 0.000000e+00 : f32
    %97 = vector.broadcast %cst_28 : f32 to vector<4x17xf32>
    %98 = tpu.concatenate %96, %97 in 1 : vector<4x256xf32>, vector<4x17xf32> -> vector<4x273xf32>
    %99 = vector.extract_strided_slice %98 {offsets = [0, 0], sizes = [1, 256], strides = [1, 1]} : vector<4x273xf32> to vector<1x256xf32>
    %100 = vector.extract_strided_slice %98 {offsets = [1, 1], sizes = [1, 256], strides = [1, 1]} : vector<4x273xf32> to vector<1x256xf32>
    %cst_29 = arith.constant 0.000000e+00 : f32
    %101 = vector.broadcast %cst_29 : f32 to vector<1x256xf32>
    %102 = arith.select %22, %100, %101 : vector<1x256xi1>, vector<1x256xf32>
    %103 = arith.addf %99, %102 : vector<1x256xf32>
    %104 = vector.extract_strided_slice %98 {offsets = [2, 16], sizes = [1, 256], strides = [1, 1]} : vector<4x273xf32> to vector<1x256xf32>
    %105 = arith.addf %103, %104 : vector<1x256xf32>
    %106 = vector.extract_strided_slice %98 {offsets = [3, 17], sizes = [1, 256], strides = [1, 1]} : vector<4x273xf32> to vector<1x256xf32>
    %cst_30 = arith.constant 0.000000e+00 : f32
    %107 = vector.broadcast %cst_30 : f32 to vector<1x256xf32>
    %108 = arith.select %22, %106, %107 : vector<1x256xi1>, vector<1x256xf32>
    %109 = arith.addf %105, %108 : vector<1x256xf32>
    %c0_31 = arith.constant 0 : index
    %c0_32 = arith.constant 0 : index
    %110 = vector.load %arg5[%c0_31, %c0_32] : memref<1x1xf32, #tpu.memory_space<vmem>>, vector<1x1xf32>
    %111 = vector.broadcast %110 : vector<1x1xf32> to vector<1x256xf32>
    %112 = arith.addf %109, %111 : vector<1x256xf32>
    %113 = arith.addf %92, %94 : vector<20x256xf32>
    %cst_33 = arith.constant 2.000000e+00 : f32
    %114 = vector.broadcast %cst_33 : f32 to vector<1x256xf32>
    %115 = arith.mulf %114, %1 : vector<1x256xf32>
    %116 = arith.addf %115, %112 : vector<1x256xf32>
    %117 = vector.broadcast %116 : vector<1x256xf32> to vector<20x256xf32>
    %118 = arith.addf %113, %117 : vector<20x256xf32>
    %c0_34 = arith.constant 0 : index
    %c0_35 = arith.constant 0 : index
    %c0_36 = arith.constant 0 : index
    %119 = vector.load %arg6[%c0_34, %c0_35, %c0_36] : memref<1x20x256xf32, #tpu.memory_space<vmem>>, vector<1x20x256xf32>
    %120 = vector.shape_cast %119 : vector<1x20x256xf32> to vector<20x256xf32>
    %121 = vector.shape_cast %118 : vector<20x256xf32> to vector<1x20x256xf32>
    tpu.vector_store %arg6[%c0_34, %c0_35, %c0_36], %121 {strides = array<i32>} : memref<1x20x256xf32, #tpu.memory_space<vmem>>, vector<1x20x256xf32>,
    return
  }
  func.func @transform_0(%arg0: i32) -> (i32, i32, i32) {
    %c0_i32 = arith.constant 0 : i32
    %c0_i32_0 = arith.constant 0 : i32
    %c0_i32_1 = arith.constant 0 : i32
    return %arg0, %c0_i32, %c0_i32_0 : i32, i32, i32
  }
  func.func @transform_1(%arg0: i32) -> (i32, i32) {
    %c0_i32 = arith.constant 0 : i32
    %c0_i32_0 = arith.constant 0 : i32
    %c0_i32_1 = arith.constant 0 : i32
    return %c0_i32, %c0_i32_0 : i32, i32
  }
  func.func @transform_2(%arg0: i32) -> (i32, i32) {
    %c0_i32 = arith.constant 0 : i32
    %c0_i32_0 = arith.constant 0 : i32
    %c0_i32_1 = arith.constant 0 : i32
    return %c0_i32, %c0_i32_0 : i32, i32
  }
  func.func @transform_3(%arg0: i32) -> (i32, i32) {
    %c0_i32 = arith.constant 0 : i32
    %c0_i32_0 = arith.constant 0 : i32
    %c0_i32_1 = arith.constant 0 : i32
    return %c0_i32, %c0_i32_0 : i32, i32
  }
  func.func @transform_4(%arg0: i32) -> (i32, i32) {
    %c0_i32 = arith.constant 0 : i32
    %c0_i32_0 = arith.constant 0 : i32
    %c0_i32_1 = arith.constant 0 : i32
    return %c0_i32, %c0_i32_0 : i32, i32
  }
  func.func @transform_5(%arg0: i32) -> (i32, i32, i32) {
    %c0_i32 = arith.constant 0 : i32
    %c0_i32_0 = arith.constant 0 : i32
    %c0_i32_1 = arith.constant 0 : i32
    return %arg0, %c0_i32, %c0_i32_0 : i32, i32, i32
  }
}

</mosaic_0001>

<llo_original>
// kernel: model_forward.1
$region0: #{model_forward.1}
  #allocation0 [shape = 'u32[]', space=smem, size = 0x4, offset = 0x4, fixed_abs, tag = 'smem constant byte address 0x4 - core index']
  #allocation1 [shape = 'u32[144,128]{1,0:T(1,128)}', space=vmem, size = 0x12000, scoped, tag = 'internal scratch']
  #allocation2 [shape = 'f32[1,1]{1,0:T(1,128)S(1)}', space=vmem, size = 0x200, scoped, tag = 'scoped memory for model_forward.1']
  %s0 = inlined_call_operand.vmem [shape: f32[2,1,256], index: 0, kind: input, shape index: {}]
  %s1 = inlined_call_operand.vmem [shape: f32[20,9], index: 1, kind: input, shape index: {}]
  %s2 = inlined_call_operand.vmem [shape: f32[20,1], index: 2, kind: input, shape index: {}]
  %s3 = inlined_call_operand.vmem [shape: f32[4,20], index: 3, kind: input, shape index: {}]
  %s4 = inlined_call_operand.<no memory space> [shape: f32[1,1], index: 4, kind: input, shape index: {}]
  %s5 = inlined_call_operand.vmem [shape: f32[2,20,256], index: 5, kind: output, shape index: {}]
  %s6 = sld [smem:[#allocation0]]
  $region53: #{model_forward.1} parent=0
    _
  %s8 = ssub.s32 1, %s6
  %s9 = scalar_select 0, %s8, %s6
  %v10 = vstv %s4
  %11 = vst [vmem:[#allocation2] sm:$0x1] %v10
  loop: start=0, step=1, limit=4
  $region2: #{model_forward.1} parent=0 // loop_pre_header
    _
  $region3: #{model_forward.1} parent=0 // loop_header
    %s13 = sphi 0, %s17
    %p14 = scmp.ge.s32.totalorder %s13, 4
    %s23 = sphi 0, %s25
    %s26 = sphi 0, %s23
    %s27 = sphi 0, %s26
    %s43 = sphi 0, %s27
    %s47 = sphi 0, %s47
    %s49 = sphi 0, %s47
    %s50 = sphi 0, %s49
    %s64 = sphi 0, %s50
    %s68 = sphi 0, %s68
    %s70 = sphi 0, %s68
    %s71 = sphi 0, %s70
    %s85 = sphi 0, %s71
    %s89 = sphi 0, %s89
    %s91 = sphi 0, %s89
    %s92 = sphi 0, %s91
    %s106 = sphi 0, %s92
    %s110 = sphi 0, %s110
    %s112 = sphi 0, %s110
    %s113 = sphi 0, %s112
    %s127 = sphi 0, %s113
    %s133 = sphi 0, %s135
    %s136 = sphi 0, %s133
    %s137 = sphi 0, %s136
    %s153 = sphi 0, %s137
  $region4: #{model_forward.1} parent=0 // loop_header_branch
    %16 = sbr.rel (%p14) target = $region8
  $region5: #{model_forward.1} parent=0 // loop_body
    %s18 = ssub.s32 %s13, 1
    %s19 = ssub.s32 %s13, 2
    %s20 = sadd.s32 %s13, 1
    %s21 = ssub.s32 %s13, %s20
    %p22 = scmp.eq.s32.totalorder %s21, 0
    %s24 = sadd.s32 %s23, 1
    %s25 = scalar_select %p22, %s23, %s24
    %p28 = pneg %p22
    %p29 = scmp.eq.s32.totalorder %s13, 1
    %p30 = por %p28, %p29
    %p31 = scmp.ne.s32.totalorder %s23, %s26
    %p32 = scmp.eq.s32.totalorder %s13, 0
    %p33 = por %p31, %p32
    %p34 = scmp.ne.s32.totalorder %s23, %s26
    %p35 = scmp.eq.s32.totalorder %s18, 1
    %p36 = por %p34, %p35
    %p37 = scmp.ne.s32.totalorder %s26, %s27
    %p38 = scmp.eq.s32.totalorder %s18, 0
    %p39 = por %p37, %p38
    %p40 = scmp.ne.s32.totalorder %s26, %s27
    %p41 = scmp.eq.s32.totalorder %s19, 1
    %p42 = por %p40, %p41
    %p44 = scmp.ne.s32.totalorder %s27, %s43
    %p45 = scmp.eq.s32.totalorder %s19, 0
    %p46 = por %p44, %p45
    %s48 = sadd.s32 %s47, 1
    %p51 = scmp.eq.s32.totalorder %s13, 1
    %p52 = scmp.ne.s32.totalorder %s47, %s49
    %p53 = scmp.eq.s32.totalorder %s13, 0
    %p54 = por %p52, %p53
    %p55 = scmp.ne.s32.totalorder %s47, %s49
    %p56 = scmp.eq.s32.totalorder %s18, 1
    %p57 = por %p55, %p56
    %p58 = scmp.ne.s32.totalorder %s49, %s50
    %p59 = scmp.eq.s32.totalorder %s18, 0
    %p60 = por %p58, %p59
    %p61 = scmp.ne.s32.totalorder %s49, %s50
    %p62 = scmp.eq.s32.totalorder %s19, 1
    %p63 = por %p61, %p62
    %p65 = scmp.ne.s32.totalorder %s50, %s64
    %p66 = scmp.eq.s32.totalorder %s19, 0
    %p67 = por %p65, %p66
    %s69 = sadd.s32 %s68, 1
    %p72 = scmp.eq.s32.totalorder %s13, 1
    %p73 = scmp.ne.s32.totalorder %s68, %s70
    %p74 = scmp.eq.s32.totalorder %s13, 0
    %p75 = por %p73, %p74
    %p76 = scmp.ne.s32.totalorder %s68, %s70
    %p77 = scmp.eq.s32.totalorder %s18, 1
    %p78 = por %p76, %p77
    %p79 = scmp.ne.s32.totalorder %s70, %s71
    %p80 = scmp.eq.s32.totalorder %s18, 0
    %p81 = por %p79, %p80
    %p82 = scmp.ne.s32.totalorder %s70, %s71
    %p83 = scmp.eq.s32.totalorder %s19, 1
    %p84 = por %p82, %p83
    %p86 = scmp.ne.s32.totalorder %s71, %s85
    %p87 = scmp.eq.s32.totalorder %s19, 0
    %p88 = por %p86, %p87
    %s90 = sadd.s32 %s89, 1
    %p93 = scmp.eq.s32.totalorder %s13, 1
    %p94 = scmp.ne.s32.totalorder %s89, %s91
    %p95 = scmp.eq.s32.totalorder %s13, 0
    %p96 = por %p94, %p95
    %p97 = scmp.ne.s32.totalorder %s89, %s91
    %p98 = scmp.eq.s32.totalorder %s18, 1
    %p99 = por %p97, %p98
    %p100 = scmp.ne.s32.totalorder %s91, %s92
    %p101 = scmp.eq.s32.totalorder %s18, 0
    %p102 = por %p100, %p101
    %p103 = scmp.ne.s32.totalorder %s91, %s92
    %p104 = scmp.eq.s32.totalorder %s19, 1
    %p105 = por %p103, %p104
    %p107 = scmp.ne.s32.totalorder %s92, %s106
    %p108 = scmp.eq.s32.totalorder %s19, 0
    %p109 = por %p107, %p108
    %s111 = sadd.s32 %s110, 1
    %p114 = scmp.eq.s32.totalorder %s13, 1
    %p115 = scmp.ne.s32.totalorder %s110, %s112
    %p116 = scmp.eq.s32.totalorder %s13, 0
    %p117 = por %p115, %p116
    %p118 = scmp.ne.s32.totalorder %s110, %s112
    %p119 = scmp.eq.s32.totalorder %s18, 1
    %p120 = por %p118, %p119
    %p121 = scmp.ne.s32.totalorder %s112, %s113
    %p122 = scmp.eq.s32.totalorder %s18, 0
    %p123 = por %p121, %p122
    %p124 = scmp.ne.s32.totalorder %s112, %s113
    %p125 = scmp.eq.s32.totalorder %s19, 1
    %p126 = por %p124, %p125
    %p128 = scmp.ne.s32.totalorder %s113, %s127
    %p129 = scmp.eq.s32.totalorder %s19, 0
    %p130 = por %p128, %p129
    %s131 = ssub.s32 %s13, %s20
    %p132 = scmp.eq.s32.totalorder %s131, 0
    %s134 = sadd.s32 %s133, 1
    %s135 = scalar_select %p132, %s133, %s134
    %p138 = pneg %p132
    %p139 = scmp.eq.s32.totalorder %s13, 1
    %p140 = por %p138, %p139
    %p141 = scmp.ne.s32.totalorder %s133, %s136
    %p142 = scmp.eq.s32.totalorder %s13, 0
    %p143 = por %p141, %p142
    %p144 = scmp.ne.s32.totalorder %s133, %s136
    %p145 = scmp.eq.s32.totalorder %s18, 1
    %p146 = por %p144, %p145
    %p147 = scmp.ne.s32.totalorder %s136, %s137
    %p148 = scmp.eq.s32.totalorder %s18, 0
    %p149 = por %p147, %p148
    %p150 = scmp.ne.s32.totalorder %s136, %s137
    %p151 = scmp.eq.s32.totalorder %s19, 1
    %p152 = por %p150, %p151
    %p154 = scmp.ne.s32.totalorder %s137, %s153
    %p155 = scmp.eq.s32.totalorder %s19, 0
    %p156 = por %p154, %p155
    %p157 = scmp.le.s32.totalorder 1, %s13
    %p158 = scmp.lt.s32.totalorder %s13, 3
    %p159 = pnand %p157, %p158
    %p160 = pneg %p159
    // Predicated region
    $region9: #{model_forward.1} parent=5 // pred_check
      _
    $region10: #{model_forward.1} parent=5 // pred_check_branch
      %162 = sbr.rel (%p159) target = $region12
    $region11: #{model_forward.1} parent=5 // pred_region
      %s163 = ssub.s32 %s13, 1
      // Predicated region
      $region13: #{model_forward.1} parent=11 // pred_check
        %p164 = pneg %p60
      $region14: #{model_forward.1} parent=11 // pred_check_branch
        %166 = sbr.rel (%p164) target = $region16
      $region15: #{model_forward.1} parent=11 // pred_region
        _
      $region16: #{model_forward.1} parent=11 // pred_fallthru
        _
      // Predicated region
      $region17: #{model_forward.1} parent=11 // pred_check
        %p167 = pneg %p81
      $region18: #{model_forward.1} parent=11 // pred_check_branch
        %169 = sbr.rel (%p167) target = $region20
      $region19: #{model_forward.1} parent=11 // pred_region
        _
      $region20: #{model_forward.1} parent=11 // pred_fallthru
        _
      // Predicated region
      $region21: #{model_forward.1} parent=11 // pred_check
        %p170 = pneg %p102
      $region22: #{model_forward.1} parent=11 // pred_check_branch
        %172 = sbr.rel (%p170) target = $region24
      $region23: #{model_forward.1} parent=11 // pred_region
        _
      $region24: #{model_forward.1} parent=11 // pred_fallthru
        _
      // Predicated region
      $region25: #{model_forward.1} parent=11 // pred_check
        %p173 = pneg %p123
      $region26: #{model_forward.1} parent=11 // pred_check_branch
        %175 = sbr.rel (%p173) target = $region28
      $region27: #{model_forward.1} parent=11 // pred_region
        _
      $region28: #{model_forward.1} parent=11 // pred_fallthru
        _
    $region12: #{model_forward.1} parent=5 // pred_fallthru
      _
    %p176 = scmp.lt.s32.totalorder %s13, 2
    // Predicated region
    $region29: #{model_forward.1} parent=5 // pred_check
      %p177 = pneg %p176
    $region30: #{model_forward.1} parent=5 // pred_check_branch
      %179 = sbr.rel (%p177) target = $region32
    $region31: #{model_forward.1} parent=5 // pred_region
      // Predicated region
      $region33: #{model_forward.1} parent=31 // pred_check
        %p180 = pneg %p33
      $region34: #{model_forward.1} parent=31 // pred_check_branch
        %182 = sbr.rel (%p180) target = $region36
      $region35: #{model_forward.1} parent=31 // pred_region
        %p183 = scmp.lt.s32.totalorder %s13, 1
        %s184 = scalar_select %p183, %s13, 1
        %s185 = smul.addr %s184, 2
        %s186 = scalar_lea.vmem %s0, %s185
      $region36: #{model_forward.1} parent=31 // pred_fallthru
        _
    $region32: #{model_forward.1} parent=5 // pred_fallthru
      _
    %p187 = scmp.le.s32.totalorder 1, %s13
    %p188 = scmp.lt.s32.totalorder %s13, 3
    %p189 = pnand %p187, %p188
    %p190 = pneg %p189
    // Predicated region
    $region37: #{model_forward.1} parent=5 // pred_check
      _
    $region38: #{model_forward.1} parent=5 // pred_check_branch
      %192 = sbr.rel (%p189) target = $region40
    $region39: #{model_forward.1} parent=5 // pred_region
      %s193 = ssub.s32 %s13, 1
      %p194 = scmp.lt.s32.totalorder %s18, 1
      %s195 = scalar_select %p194, %s18, 1
      %s196 = smul.addr %s195, 2
      %s197 = scalar_lea.vmem %s0, %s196
      %p198 = pneg %p39
      %p199 = pneg %p36
      %p200 = pneg %p60
      %p201 = pneg %p57
      %p202 = pneg %p81
      %p203 = pneg %p78
      %p204 = pneg %p102
      %p205 = pneg %p99
      %p206 = pneg %p123
      %p207 = pneg %p120
      %p208 = pneg %p149
      %p209 = pneg %p146
      %p210 = scmp.lt.s32.totalorder %s18, 1
      %s211 = scalar_select %p210, %s18, 1
      %s212 = smul.addr %s211, 6
      %s213 = smul.addr %s212, 8
      %s214 = scalar_lea.vmem %s5, %s213
      %p215 = scmp.lt.s32.totalorder %s18, 1
      %s216 = scalar_select %p215, %s18, 1
      %s217 = smul.addr %s216, 2
      %s218 = scalar_lea.vmem %s0, %s217
      %p219 = scmp.lt.s32.totalorder %s18, 1
      %s220 = scalar_select %p219, %s18, 1
      %s221 = smul.addr %s220, 6
      %s222 = smul.addr %s221, 8
      %s223 = scalar_lea.vmem %s5, %s222
      %v224 = vld [vmem:[%s218] sm:$0x3]
      %v225 = vlaneseq
      %v226 = vand.u32 %v225, 127
      %v227 = vadd.s32 %v226, 128
      %vm228 = vcmp.lt.s32.totalorder %v226, 0
      %v229 = vsub.s32 0, %v226
      %v230 = vsel %vm228, %v229, %v226
      %v231 = vshrl.u32 %v230, 4
      %v232 = vand.u32 %v230, 15
      %v233 = vsub.s32 0, %v232
      %v234 = vsel %vm228, %v233, %v232
      %vm235 = vcmp.lt.s32.totalorder %v227, 0
      %v236 = vsub.s32 0, %v227
      %v237 = vsel %vm235, %v236, %v227
      %v238 = vshrl.u32 %v237, 4
      %v239 = vand.u32 %v237, 15
      %v240 = vsub.s32 0, %v239
      %v241 = vsel %vm235, %v240, %v239
      %vm242 = vcmp.ne.s32.totalorder %v234, 0
      %vm243 = vcmp.ne.s32.totalorder %v241, 0
      %vm244 = vcmp.lt.s32.totalorder %v234, 0
      %vm245 = vcmp.lt.s32.totalorder %v241, 0
      %vm246 = vmand %vm244, %vm242
      %vm247 = vmand %vm245, %vm243
      %v248 = vadd.s32 %v234, 16
      %v249 = vadd.s32 %v241, 16
      %v250 = vsel %vm246, %v248, %v234
      %v251 = vsel %vm247, %v249, %v241
      %vm252 = vcmp.ge.s32.totalorder %v250, 1
      %vm253 = vcmp.ge.s32.totalorder %v251, 1
      %vm254 = vcmp.le.s32.totalorder %v250, 14
      %vm255 = vcmp.le.s32.totalorder %v251, 14
      %v257 = vlaneseq
      %v258 = vshrl.u32 %v257, 7
      %v259 = vsub.s32 0, %v258
      %v260 = vrot.slane %v224, %v259
      %v261 = vlaneseq
      %v262 = vshrl.u32 %v261, 7
      %v263 = vsub.s32 1, %v262
      %v264 = vrot.slane %v224, %v263
      %265 = vrot.lane.b32.xlu0 %v260, 17
      %v266 = vpop.permute.xlu0 %265
      %267 = vrot.lane.b32.xlu0 %v264, 17
      %v268 = vpop.permute.xlu0 %267
      %vm269 = vcmask 138240
      %v270 = vsel %vm269, %v266, %v268
      %v274 = vsel %vm269, 0.0, %v266
      %v275 = vsel %vm269, %v268, 0.0
      %v276 = vld [vmem:[%s1] sm:$0xff]
      %v277 = vld [vmem:[%s1 + $0x8] sm:$0xff]
      %v278 = vld [vmem:[%s1 + $0x10] sm:$0xf]
      %v279 = vsel %vm252, %v274, 0.0
      %v280 = vsel %vm253, %v270, 0.0
      %282 = vset.pattern.permute.xlu0 0
      %283 = vperm.xlu0 %282, %v276
      %v284 = vpop.permute.xlu0 %283
      %287 = vset.pattern.permute.xlu0 0
      %288 = vperm.xlu0 %287, %v277
      %v289 = vpop.permute.xlu0 %288
      %292 = vset.pattern.permute.xlu0 0
      %293 = vperm.xlu0 %292, %v278
      %v294 = vpop.permute.xlu0 %293
      %v296 = vlaneseq
      %v297 = vshrl.u32 %v296, 7
      %v298 = vsub.s32 0, %v297
      %v299 = vrot.slane %v279, %v298
      %v300 = vlaneseq
      %v301 = vshrl.u32 %v300, 7
      %v302 = vsub.s32 0, %v301
      %v303 = vrot.slane %v280, %v302
      %v304 = vmul.f32 %v284, %v299
      %v305 = vmul.f32 %v284, %v303
      %v306 = vmul.f32 %v289, %v299
      %v307 = vmul.f32 %v289, %v303
      %v308 = vmul.f32 %v294, %v299
      %v309 = vmul.f32 %v294, %v303
      %310 = vset.pattern.permute.xlu0 1
      %311 = vperm.xlu0 %310, %v276
      %v312 = vpop.permute.xlu0 %311
      %314 = vset.pattern.permute.xlu0 1
      %315 = vperm.xlu0 %314, %v277
      %v316 = vpop.permute.xlu0 %315
      %318 = vset.pattern.permute.xlu0 1
      %319 = vperm.xlu0 %318, %v278
      %v320 = vpop.permute.xlu0 %319
      %v322 = vlaneseq
      %v323 = vshrl.u32 %v322, 7
      %v324 = vsub.s32 0, %v323
      %v325 = vrot.slane %v274, %v324
      %v326 = vlaneseq
      %v327 = vshrl.u32 %v326, 7
      %v328 = vsub.s32 0, %v327
      %v329 = vrot.slane %v270, %v328
      %v330 = vlaneseq
      %v331 = vshrl.u32 %v330, 7
      %v332 = vsub.s32 0, %v331
      %v333 = vrot.slane %v275, %v332
      %v334 = vmul.f32 %v312, %v325
      %v335 = vmul.f32 %v312, %v329
      %v336 = vmul.f32 %v312, %v333
      %v337 = vmul.f32 %v316, %v325
      %v338 = vmul.f32 %v316, %v329
      %v339 = vmul.f32 %v316, %v333
      %v340 = vmul.f32 %v320, %v325
      %v341 = vmul.f32 %v320, %v329
      %v342 = vmul.f32 %v320, %v333
      %352 = vrot.lane.b32.xlu0 %v334, 127
      %v353 = vpop.permute.xlu0 %352
      %354 = vrot.lane.b32.xlu0 %v335, 127
      %v355 = vpop.permute.xlu0 %354
      %356 = vrot.lane.b32.xlu0 %v336, 127
      %v357 = vpop.permute.xlu0 %356
      %358 = vrot.lane.b32.xlu0 %v337, 127
      %v359 = vpop.permute.xlu0 %358
      %360 = vrot.lane.b32.xlu0 %v338, 127
      %v361 = vpop.permute.xlu0 %360
      %362 = vrot.lane.b32.xlu0 %v339, 127
      %v363 = vpop.permute.xlu0 %362
      %364 = vrot.lane.b32.xlu0 %v340, 127
      %v365 = vpop.permute.xlu0 %364
      %366 = vrot.lane.b32.xlu0 %v341, 127
      %v367 = vpop.permute.xlu0 %366
      %368 = vrot.lane.b32.xlu0 %v342, 127
      %v369 = vpop.permute.xlu0 %368
      %vm370 = vcmask 1039360
      %v371 = vsel %vm370, %v353, %v355
      %v372 = vsel %vm370, %v355, %v357
      %v373 = vsel %vm370, %v359, %v361
      %v374 = vsel %vm370, %v361, %v363
      %v375 = vsel %vm370, %v365, %v367
      %v376 = vsel %vm370, %v367, %v369
      %v383 = vadd.f32 %v304, %v371
      %v384 = vadd.f32 %v305, %v372
      %v385 = vadd.f32 %v306, %v373
      %v386 = vadd.f32 %v307, %v374
      %v387 = vadd.f32 %v308, %v375
      %v388 = vadd.f32 %v309, %v376
      %391 = vrot.lane.b32.xlu0 %v274, 126
      %v392 = vpop.permute.xlu0 %391
      %393 = vrot.lane.b32.xlu0 %v270, 126
      %v394 = vpop.permute.xlu0 %393
      %395 = vrot.lane.b32.xlu0 %v275, 126
      %v396 = vpop.permute.xlu0 %395
      %vm397 = vcmask 1031168
      %v398 = vsel %vm397, %v392, %v394
      %v399 = vsel %vm397, %v394, %v396
      %v402 = vsel %vm254, %v398, 0.0
      %v403 = vsel %vm255, %v399, 0.0
      %404 = vset.pattern.permute.xlu0 2
      %405 = vperm.xlu0 %404, %v276
      %v406 = vpop.permute.xlu0 %405
      %408 = vset.pattern.permute.xlu0 2
      %409 = vperm.xlu0 %408, %v277
      %v410 = vpop.permute.xlu0 %409
      %412 = vset.pattern.permute.xlu0 2
      %413 = vperm.xlu0 %412, %v278
      %v414 = vpop.permute.xlu0 %413
      %v416 = vlaneseq
      %v417 = vshrl.u32 %v416, 7
      %v418 = vsub.s32 0, %v417
      %v419 = vrot.slane %v402, %v418
      %v420 = vlaneseq
      %v421 = vshrl.u32 %v420, 7
      %v422 = vsub.s32 0, %v421
      %v423 = vrot.slane %v403, %v422
      %v424 = vmul.f32 %v406, %v419
      %v425 = vmul.f32 %v406, %v423
      %v426 = vmul.f32 %v410, %v419
      %v427 = vmul.f32 %v410, %v423
      %v428 = vmul.f32 %v414, %v419
      %v429 = vmul.f32 %v414, %v423
      %v430 = vadd.f32 %v383, %v424
      %v431 = vadd.f32 %v384, %v425
      %v432 = vadd.f32 %v385, %v426
      %v433 = vadd.f32 %v386, %v427
      %v434 = vadd.f32 %v387, %v428
      %v435 = vadd.f32 %v388, %v429
      %436 = vrot.lane.b32.xlu0 %v274, 112
      %v437 = vpop.permute.xlu0 %436
      %438 = vrot.lane.b32.xlu0 %v270, 112
      %v439 = vpop.permute.xlu0 %438
      %440 = vrot.lane.b32.xlu0 %v275, 112
      %v441 = vpop.permute.xlu0 %440
      %vm442 = vcmask 916480
      %v443 = vsel %vm442, %v437, %v439
      %v444 = vsel %vm442, %v439, %v441
      %v447 = vsel %vm252, %v443, 0.0
      %v448 = vsel %vm253, %v444, 0.0
      %449 = vset.pattern.permute.xlu0 3
      %450 = vperm.xlu0 %449, %v276
      %v451 = vpop.permute.xlu0 %450
      %453 = vset.pattern.permute.xlu0 3
      %454 = vperm.xlu0 %453, %v277
      %v455 = vpop.permute.xlu0 %454
      %457 = vset.pattern.permute.xlu0 3
      %458 = vperm.xlu0 %457, %v278
      %v459 = vpop.permute.xlu0 %458
      %v461 = vlaneseq
      %v462 = vshrl.u32 %v461, 7
      %v463 = vsub.s32 0, %v462
      %v464 = vrot.slane %v447, %v463
      %v465 = vlaneseq
      %v466 = vshrl.u32 %v465, 7
      %v467 = vsub.s32 0, %v466
      %v468 = vrot.slane %v448, %v467
      %v469 = vmul.f32 %v451, %v464
      %v470 = vmul.f32 %v451, %v468
      %v471 = vmul.f32 %v455, %v464
      %v472 = vmul.f32 %v455, %v468
      %v473 = vmul.f32 %v459, %v464
      %v474 = vmul.f32 %v459, %v468
      %v475 = vadd.f32 %v430, %v469
      %v476 = vadd.f32 %v431, %v470
      %v477 = vadd.f32 %v432, %v471
      %v478 = vadd.f32 %v433, %v472
      %v479 = vadd.f32 %v434, %v473
      %v480 = vadd.f32 %v435, %v474
      %481 = vset.pattern.permute.xlu0 4
      %482 = vperm.xlu0 %481, %v276
      %v483 = vpop.permute.xlu0 %482
      %485 = vset.pattern.permute.xlu0 4
      %486 = vperm.xlu0 %485, %v277
      %v487 = vpop.permute.xlu0 %486
      %489 = vset.pattern.permute.xlu0 4
      %490 = vperm.xlu0 %489, %v278
      %v491 = vpop.permute.xlu0 %490
      %v493 = vmul.f32 %v483, %v325
      %v494 = vmul.f32 %v483, %v329
      %v495 = vmul.f32 %v483, %v333
      %v496 = vmul.f32 %v487, %v325
      %v497 = vmul.f32 %v487, %v329
      %v498 = vmul.f32 %v487, %v333
      %v499 = vmul.f32 %v491, %v325
      %v500 = vmul.f32 %v491, %v329
      %v501 = vmul.f32 %v491, %v333
      %511 = vrot.lane.b32.xlu0 %v493, 111
      %v512 = vpop.permute.xlu0 %511
      %513 = vrot.lane.b32.xlu0 %v494, 111
      %v514 = vpop.permute.xlu0 %513
      %515 = vrot.lane.b32.xlu0 %v495, 111
      %v516 = vpop.permute.xlu0 %515
      %517 = vrot.lane.b32.xlu0 %v496, 111
      %v518 = vpop.permute.xlu0 %517
      %519 = vrot.lane.b32.xlu0 %v497, 111
      %v520 = vpop.permute.xlu0 %519
      %521 = vrot.lane.b32.xlu0 %v498, 111
      %v522 = vpop.permute.xlu0 %521
      %523 = vrot.lane.b32.xlu0 %v499, 111
      %v524 = vpop.permute.xlu0 %523
      %525 = vrot.lane.b32.xlu0 %v500, 111
      %v526 = vpop.permute.xlu0 %525
      %527 = vrot.lane.b32.xlu0 %v501, 111
      %v528 = vpop.permute.xlu0 %527
      %vm529 = vcmask 908288
      %v530 = vsel %vm529, %v512, %v514
      %v531 = vsel %vm529, %v514, %v516
      %v532 = vsel %vm529, %v518, %v520
      %v533 = vsel %vm529, %v520, %v522
      %v534 = vsel %vm529, %v524, %v526
      %v535 = vsel %vm529, %v526, %v528
      %v542 = vadd.f32 %v475, %v530
      %v543 = vadd.f32 %v476, %v531
      %v544 = vadd.f32 %v477, %v532
      %v545 = vadd.f32 %v478, %v533
      %v546 = vadd.f32 %v479, %v534
      %v547 = vadd.f32 %v480, %v535
      %548 = vrot.lane.b32.xlu0 %v274, 110
      %v549 = vpop.permute.xlu0 %548
      %550 = vrot.lane.b32.xlu0 %v270, 110
      %v551 = vpop.permute.xlu0 %550
      %552 = vrot.lane.b32.xlu0 %v275, 110
      %v553 = vpop.permute.xlu0 %552
      %vm554 = vcmask 900096
      %v555 = vsel %vm554, %v549, %v551
      %v556 = vsel %vm554, %v551, %v553
      %v559 = vsel %vm254, %v555, 0.0
      %v560 = vsel %vm255, %v556, 0.0
      %561 = vset.pattern.permute.xlu0 5
      %562 = vperm.xlu0 %561, %v276
      %v563 = vpop.permute.xlu0 %562
      %565 = vset.pattern.permute.xlu0 5
      %566 = vperm.xlu0 %565, %v277
      %v567 = vpop.permute.xlu0 %566
      %569 = vset.pattern.permute.xlu0 5
      %570 = vperm.xlu0 %569, %v278
      %v571 = vpop.permute.xlu0 %570
      %v573 = vlaneseq
      %v574 = vshrl.u32 %v573, 7
      %v575 = vsub.s32 0, %v574
      %v576 = vrot.slane %v559, %v575
      %v577 = vlaneseq
      %v578 = vshrl.u32 %v577, 7
      %v579 = vsub.s32 0, %v578
      %v580 = vrot.slane %v560, %v579
      %v581 = vmul.f32 %v563, %v576
      %v582 = vmul.f32 %v563, %v580
      %v583 = vmul.f32 %v567, %v576
      %v584 = vmul.f32 %v567, %v580
      %v585 = vmul.f32 %v571, %v576
      %v586 = vmul.f32 %v571, %v580
      %v587 = vadd.f32 %v542, %v581
      %v588 = vadd.f32 %v543, %v582
      %v589 = vadd.f32 %v544, %v583
      %v590 = vadd.f32 %v545, %v584
      %v591 = vadd.f32 %v546, %v585
      %v592 = vadd.f32 %v547, %v586
      %593 = vrot.lane.b32.xlu0 %v274, 96
      %v594 = vpop.permute.xlu0 %593
      %595 = vrot.lane.b32.xlu0 %v270, 96
      %v596 = vpop.permute.xlu0 %595
      %597 = vrot.lane.b32.xlu0 %v275, 96
      %v598 = vpop.permute.xlu0 %597
      %vm599 = vcmask 785408
      %v600 = vsel %vm599, %v594, %v596
      %v601 = vsel %vm599, %v596, %v598
      %v604 = vsel %vm252, %v600, 0.0
      %v605 = vsel %vm253, %v601, 0.0
      %606 = vset.pattern.permute.xlu0 6
      %607 = vperm.xlu0 %606, %v276
      %v608 = vpop.permute.xlu0 %607
      %610 = vset.pattern.permute.xlu0 6
      %611 = vperm.xlu0 %610, %v277
      %v612 = vpop.permute.xlu0 %611
      %614 = vset.pattern.permute.xlu0 6
      %615 = vperm.xlu0 %614, %v278
      %v616 = vpop.permute.xlu0 %615
      %v618 = vlaneseq
      %v619 = vshrl.u32 %v618, 7
      %v620 = vsub.s32 0, %v619
      %v621 = vrot.slane %v604, %v620
      %v622 = vlaneseq
      %v623 = vshrl.u32 %v622, 7
      %v624 = vsub.s32 0, %v623
      %v625 = vrot.slane %v605, %v624
      %v626 = vmul.f32 %v608, %v621
      %v627 = vmul.f32 %v608, %v625
      %v628 = vmul.f32 %v612, %v621
      %v629 = vmul.f32 %v612, %v625
      %v630 = vmul.f32 %v616, %v621
      %v631 = vmul.f32 %v616, %v625
      %v632 = vadd.f32 %v587, %v626
      %v633 = vadd.f32 %v588, %v627
      %v634 = vadd.f32 %v589, %v628
      %v635 = vadd.f32 %v590, %v629
      %v636 = vadd.f32 %v591, %v630
      %v637 = vadd.f32 %v592, %v631
      %638 = vset.pattern.permute.xlu0 7
      %639 = vperm.xlu0 %638, %v276
      %v640 = vpop.permute.xlu0 %639
      %642 = vset.pattern.permute.xlu0 7
      %643 = vperm.xlu0 %642, %v277
      %v644 = vpop.permute.xlu0 %643
      %646 = vset.pattern.permute.xlu0 7
      %647 = vperm.xlu0 %646, %v278
      %v648 = vpop.permute.xlu0 %647
      %v650 = vmul.f32 %v640, %v325
      %v651 = vmul.f32 %v640, %v329
      %v652 = vmul.f32 %v640, %v333
      %v653 = vmul.f32 %v644, %v325
      %v654 = vmul.f32 %v644, %v329
      %v655 = vmul.f32 %v644, %v333
      %v656 = vmul.f32 %v648, %v325
      %v657 = vmul.f32 %v648, %v329
      %v658 = vmul.f32 %v648, %v333
      %668 = vrot.lane.b32.xlu0 %v650, 95
      %v669 = vpop.permute.xlu0 %668
      %670 = vrot.lane.b32.xlu0 %v651, 95
      %v671 = vpop.permute.xlu0 %670
      %672 = vrot.lane.b32.xlu0 %v652, 95
      %v673 = vpop.permute.xlu0 %672
      %674 = vrot.lane.b32.xlu0 %v653, 95
      %v675 = vpop.permute.xlu0 %674
      %676 = vrot.lane.b32.xlu0 %v654, 95
      %v677 = vpop.permute.xlu0 %676
      %678 = vrot.lane.b32.xlu0 %v655, 95
      %v679 = vpop.permute.xlu0 %678
      %680 = vrot.lane.b32.xlu0 %v656, 95
      %v681 = vpop.permute.xlu0 %680
      %682 = vrot.lane.b32.xlu0 %v657, 95
      %v683 = vpop.permute.xlu0 %682
      %684 = vrot.lane.b32.xlu0 %v658, 95
      %v685 = vpop.permute.xlu0 %684
      %vm686 = vcmask 777216
      %v687 = vsel %vm686, %v669, %v671
      %v688 = vsel %vm686, %v671, %v673
      %v689 = vsel %vm686, %v675, %v677
      %v690 = vsel %vm686, %v677, %v679
      %v691 = vsel %vm686, %v681, %v683
      %v692 = vsel %vm686, %v683, %v685
      %v699 = vadd.f32 %v632, %v687
      %v700 = vadd.f32 %v633, %v688
      %v701 = vadd.f32 %v634, %v689
      %v702 = vadd.f32 %v635, %v690
      %v703 = vadd.f32 %v636, %v691
      %v704 = vadd.f32 %v637, %v692
      %705 = vrot.lane.b32.xlu0 %v274, 94
      %v706 = vpop.permute.xlu0 %705
      %707 = vrot.lane.b32.xlu0 %v270, 94
      %v708 = vpop.permute.xlu0 %707
      %709 = vrot.lane.b32.xlu0 %v275, 94
      %v710 = vpop.permute.xlu0 %709
      %vm711 = vcmask 769024
      %v712 = vsel %vm711, %v706, %v708
      %v713 = vsel %vm711, %v708, %v710
      %v716 = vsel %vm254, %v712, 0.0
      %v717 = vsel %vm255, %v713, 0.0
      %718 = vset.pattern.permute.xlu0 8
      %719 = vperm.xlu0 %718, %v276
      %v720 = vpop.permute.xlu0 %719
      %722 = vset.pattern.permute.xlu0 8
      %723 = vperm.xlu0 %722, %v277
      %v724 = vpop.permute.xlu0 %723
      %726 = vset.pattern.permute.xlu0 8
      %727 = vperm.xlu0 %726, %v278
      %v728 = vpop.permute.xlu0 %727
      %v730 = vlaneseq
      %v731 = vshrl.u32 %v730, 7
      %v732 = vsub.s32 0, %v731
      %v733 = vrot.slane %v716, %v732
      %v734 = vlaneseq
      %v735 = vshrl.u32 %v734, 7
      %v736 = vsub.s32 0, %v735
      %v737 = vrot.slane %v717, %v736
      %v738 = vmul.f32 %v720, %v733
      %v739 = vmul.f32 %v720, %v737
      %v740 = vmul.f32 %v724, %v733
      %v741 = vmul.f32 %v724, %v737
      %v742 = vmul.f32 %v728, %v733
      %v743 = vmul.f32 %v728, %v737
      %v744 = vadd.f32 %v699, %v738
      %v745 = vadd.f32 %v700, %v739
      %v746 = vadd.f32 %v701, %v740
      %v747 = vadd.f32 %v702, %v741
      %v748 = vadd.f32 %v703, %v742
      %v749 = vadd.f32 %v704, %v743
      %v750 = vld [vmem:[%s2] sm:$0xff]
      %v751 = vld [vmem:[%s2 + $0x8] sm:$0xff]
      %v752 = vld [vmem:[%s2 + $0x10] sm:$0xf]
      %754 = vset.pattern.permute.xlu0 0
      %755 = vperm.xlu0 %754, %v750
      %v756 = vpop.permute.xlu0 %755
      %759 = vset.pattern.permute.xlu0 0
      %760 = vperm.xlu0 %759, %v751
      %v761 = vpop.permute.xlu0 %760
      %764 = vset.pattern.permute.xlu0 0
      %765 = vperm.xlu0 %764, %v752
      %v766 = vpop.permute.xlu0 %765
      %v768 = vadd.f32 %v744, %v756
      %v769 = vadd.f32 %v745, %v756
      %v770 = vadd.f32 %v746, %v761
      %v771 = vadd.f32 %v747, %v761
      %v772 = vadd.f32 %v748, %v766
      %v773 = vadd.f32 %v749, %v766
      %v774 = vmax.f32 %v768, 0.0
      %v775 = vmax.f32 %v769, 0.0
      %v776 = vmax.f32 %v770, 0.0
      %v777 = vmax.f32 %v771, 0.0
      %v778 = vmax.f32 %v772, 0.0
      %v779 = vmax.f32 %v773, 0.0
      %v780 = vld [vmem:[%s3] sm:$0xf]
      %vm781 = vcmask 162816
      %v783 = vsel %vm781, %v780, 0
      %vm785 = vcmask 1043456
      %v787 = vsel %vm785, %v778, 0
      %v790 = vsel %vm785, %v779, 0
      %792 = vmatprep.subr.mxu0 %v775
      %793 = vmatpush1.msra.mxu0 %v774
      %794 = vmatprep.subr.mxu0 %v777
      %795 = vmatpush1.msra.mxu0 %v776
      %796 = vmatprep.subr.mxu0 %v790
      %797 = vmatpush1.msra.mxu0 %v787
      %798 = vmatprep.subr.mxu0 0.0
      %799 = vmatpush1.msra.mxu0 0.0
      %800 = vmatprep.subr.mxu0 0.0
      %801 = vmatpush1.msra.mxu0 0.0
      %802 = vmatprep.subr.mxu0 0.0
      %803 = vmatpush1.msra.mxu0 0.0
      %804 = vmatprep.subr.mxu0 0.0
      %805 = vmatpush1.msra.mxu0 0.0
      %806 = vmatprep.subr.mxu0 0.0
      %807 = vmatpush1.msra.mxu0 0.0
      %808 = vmatprep.subr.mxu0 0.0
      %809 = vmatpush1.msra.mxu0 0.0
      %810 = vmatprep.subr.mxu0 0.0
      %811 = vmatpush1.msra.mxu0 0.0
      %812 = vmatprep.subr.mxu0 0.0
      %813 = vmatpush1.msra.mxu0 0.0
      %814 = vmatprep.subr.mxu0 0.0
      %815 = vmatpush1.msra.mxu0 0.0
      %816 = vmatprep.subr.mxu0 0.0
      %817 = vmatpush1.msra.mxu0 0.0
      %818 = vmatprep.subr.mxu0 0.0
      %819 = vmatpush1.msra.mxu0 0.0
      %820 = vmatprep.subr.mxu0 0.0
      %821 = vmatpush1.msra.mxu0 0.0
      %822 = vmatprep.subr.mxu0 0.0
      %823 = vmatpush1.msra.mxu0 0.0
      %824 = vmatprep.subr.mxu0 0.0
      %825 = vmatpush1.msra.mxu0 0.0
      %826 = vmatprep.subr.mxu0 0.0
      %827 = vmatpush1.msra.mxu0 0.0
      %828 = vmatprep.subr.mxu0 0.0
      %829 = vmatpush1.msra.mxu0 0.0
      %830 = vmatprep.subr.mxu0 0.0
      %831 = vmatpush1.msra.mxu0 0.0
      %832 = vmatprep.subr.mxu0 0.0
      %833 = vmatpush1.msra.mxu0 0.0
      %834 = vmatprep.subr.mxu0 0.0
      %835 = vmatpush1.msra.mxu0 0.0
      %836 = vmatprep.subr.mxu0 0.0
      %837 = vmatpush1.msra.mxu0 0.0
      %838 = vmatprep.subr.mxu0 0.0
      %839 = vmatpush1.msra.mxu0 0.0
      %840 = vmatprep.subr.mxu0 0.0
      %841 = vmatpush1.msra.mxu0 0.0
      %842 = vmatprep.subr.mxu0 0.0
      %843 = vmatpush1.msra.mxu0 0.0
      %844 = vmatprep.subr.mxu0 0.0
      %845 = vmatpush1.msra.mxu0 0.0
      %846 = vmatprep.subr.mxu0 0.0
      %847 = vmatpush1.msra.mxu0 0.0
      %848 = vmatprep.subr.mxu0 0.0
      %849 = vmatpush1.msra.mxu0 0.0
      %850 = vmatprep.subr.mxu0 0.0
      %851 = vmatpush1.msra.mxu0 0.0
      %852 = vmatprep.subr.mxu0 0.0
      %853 = vmatpush1.msra.mxu0 0.0
      %854 = vmatprep.subr.mxu0 0.0
      %855 = vmatpush1.msra.mxu0 0.0
      %856 = vmatprep.mubr.f32.mxu0 0.0
      %857 = vmatmul.mubr.f32.gmra.mrb[0].mxu0 %v783
      %v858 = vpop.f32.mrb[0].mxu0
      %v859 = vadd.f32 0.0, %v858
      %v860 = vpop.f32.mrb[0].mxu0
      %v861 = vadd.f32 0.0, %v860
      %862 = vdwg.mxu0
      %v866 = vrot.slane %v859, 1
      %v867 = vrot.slane %v861, 1
      %v868 = vrot.slane 0.0, 1
      %869 = vrot.lane.b32.xlu0 %v866, 127
      %v870 = vpop.permute.xlu0 %869
      %871 = vrot.lane.b32.xlu0 %v867, 127
      %v872 = vpop.permute.xlu0 %871
      %873 = vrot.lane.b32.xlu0 %v868, 127
      %v874 = vpop.permute.xlu0 %873
      %v875 = vsel %vm370, %v870, %v872
      %v876 = vsel %vm370, %v872, %v874
      %v879 = vsel %vm254, %v875, 0.0
      %v880 = vsel %vm255, %v876, 0.0
      %v881 = vadd.f32 %v859, %v879
      %v882 = vadd.f32 %v861, %v880
      %v883 = vrot.slane %v859, 2
      %v884 = vrot.slane %v861, 2
      %v885 = vrot.slane 0.0, 2
      %886 = vrot.lane.b32.xlu0 %v883, 112
      %v887 = vpop.permute.xlu0 %886
      %888 = vrot.lane.b32.xlu0 %v884, 112
      %v889 = vpop.permute.xlu0 %888
      %890 = vrot.lane.b32.xlu0 %v885, 112
      %v891 = vpop.permute.xlu0 %890
      %v892 = vsel %vm442, %v887, %v889
      %v893 = vsel %vm442, %v889, %v891
      %v896 = vadd.f32 %v881, %v892
      %v897 = vadd.f32 %v882, %v893
      %v898 = vrot.slane %v859, 3
      %v899 = vrot.slane %v861, 3
      %v900 = vrot.slane 0.0, 3
      %901 = vrot.lane.b32.xlu0 %v898, 111
      %v902 = vpop.permute.xlu0 %901
      %903 = vrot.lane.b32.xlu0 %v899, 111
      %v904 = vpop.permute.xlu0 %903
      %905 = vrot.lane.b32.xlu0 %v900, 111
      %v906 = vpop.permute.xlu0 %905
      %v907 = vsel %vm529, %v902, %v904
      %v908 = vsel %vm529, %v904, %v906
      %v911 = vsel %vm254, %v907, 0.0
      %v912 = vsel %vm255, %v908, 0.0
      %v913 = vadd.f32 %v896, %v911
      %v914 = vadd.f32 %v897, %v912
      %v915 = vld [vmem:[#allocation2] sm:$0x1]
      %917 = vset.pattern.permute.xlu0 0
      %918 = vperm.xlu0 %917, %v915
      %v919 = vpop.permute.xlu0 %918
      %v921 = vlaneseq
      %v922 = vshrl.u32 %v921, 7
      %v923 = vsub.s32 0, %v922
      %v924 = vrot.slane %v919, %v923
      %v925 = vadd.f32 %v913, %v924
      %v926 = vadd.f32 %v914, %v924
      %v927 = vadd.f32 %v768, %v774
      %v928 = vadd.f32 %v769, %v775
      %v929 = vadd.f32 %v770, %v776
      %v930 = vadd.f32 %v771, %v777
      %v931 = vadd.f32 %v772, %v778
      %v932 = vadd.f32 %v773, %v779
      %v933 = vmul.f32 %v224, 2.0
      %v936 = vcombine.low %v925, %v926
      %v938 = vunpack.c.l.s4 1966171168
      %v939 = vunpack.c.0.s8 %v938
      %v940 = vlaneseq
      %v941 = vshrl.u32 %v940, 7
      %v942 = vsub.s32 %v939, %v941
      %v943 = vrot.slane %v936, %v942
      %v945 = vunpack.c.l.s4 1966171168
      %v946 = vunpack.c.0.s8 %v945
      %v947 = vlaneseq
      %v948 = vshrl.u32 %v947, 7
      %v949 = vsub.s32 %v946, %v948
      %v950 = vrot.slane %v943, %v949
      %v952 = vadd.f32 %v933, %v950
      %v954 = vlaneseq
      %v955 = vshrl.u32 %v954, 7
      %v956 = vsub.s32 0, %v955
      %v957 = vrot.slane %v952, %v956
      %v958 = vlaneseq
      %v959 = vshrl.u32 %v958, 7
      %v960 = vsub.s32 1, %v959
      %v961 = vrot.slane %v952, %v960
      %v964 = vadd.f32 %v927, %v957
      %v965 = vadd.f32 %v928, %v961
      %v966 = vadd.f32 %v929, %v957
      %v967 = vadd.f32 %v930, %v961
      %v968 = vadd.f32 %v931, %v957
      %v969 = vadd.f32 %v932, %v961
      %970 = vst [vmem:[%s223] sm:$0xff] %v964
      %971 = vst [vmem:[%s223 + $0x8] sm:$0xff] %v965
      %972 = vst [vmem:[%s223 + $0x10] sm:$0xff] %v966
      %973 = vst [vmem:[%s223 + $0x18] sm:$0xff] %v967
      %974 = vst [vmem:[%s223 + $0x20] sm:$0xf] %v968
      %975 = vst [vmem:[%s223 + $0x28] sm:$0xf] %v969
      %p976 = scmp.lt.s32.totalorder %s18, 1
      %s977 = scalar_select %p976, %s18, 1
      %s978 = smul.addr %s977, 6
      %s979 = smul.addr %s978, 8
      %s980 = scalar_lea.vmem %s5, %s979
      // Predicated region
      $region41: #{model_forward.1} parent=39 // pred_check
        %p981 = pneg %p146
      $region42: #{model_forward.1} parent=39 // pred_check_branch
        %983 = sbr.rel (%p981) target = $region44
      $region43: #{model_forward.1} parent=39 // pred_region
        _
      $region44: #{model_forward.1} parent=39 // pred_fallthru
        _
    $region40: #{model_forward.1} parent=5 // pred_fallthru
      _
    %p984 = scmp.le.s32.totalorder 2, %s13
    // Predicated region
    $region45: #{model_forward.1} parent=5 // pred_check
      %p985 = pneg %p984
    $region46: #{model_forward.1} parent=5 // pred_check_branch
      %987 = sbr.rel (%p985) target = $region48
    $region47: #{model_forward.1} parent=5 // pred_region
      %s988 = ssub.s32 %s13, 2
      // Predicated region
      $region49: #{model_forward.1} parent=47 // pred_check
        %p989 = pneg %p152
      $region50: #{model_forward.1} parent=47 // pred_check_branch
        %991 = sbr.rel (%p989) target = $region52
      $region51: #{model_forward.1} parent=47 // pred_region
        %p992 = scmp.lt.s32.totalorder %s19, 1
        %s993 = scalar_select %p992, %s19, 1
        %s994 = smul.addr %s993, 6
        %s995 = smul.addr %s994, 8
        %s996 = scalar_lea.vmem %s5, %s995
      $region52: #{model_forward.1} parent=47 // pred_fallthru
        _
    $region48: #{model_forward.1} parent=5 // pred_fallthru
      _
  $region6: #{model_forward.1} parent=0 // loop_footer
    %s17 = sadd.s32 1, %s13
  $region7: #{model_forward.1} parent=0 // loop_footer_branch
    %12 = sbr.rel target = $region3
  $region8: #{model_forward.1} parent=0 // loop_exit
    _

</llo_original>
